<compile_context>
chip_gen: v6e
topology: v6e:2x2x1
jax: 0.10.0
libtpu: 0.0.40
codegen_flags: <defaults>
</compile_context>

<pallas_src>
import math

import jax
import jax.numpy as jnp
from jax.experimental import pallas as pl
from jax.experimental.pallas import tpu as pltpu

_LANE = 128


def _make_mask_kernel(threshold: float, reps: int):
    def mask_kernel(x_ref, mask_ref, o_ref):
        # mask_ref: (C, col_block) f32, batch-shared.  keep is pre-folded into
        # the mask (value 40 -> sigmoid == 1.0), so no select is needed here.
        m = jax.nn.sigmoid(mask_ref[...])
        m = jax.nn.sigmoid((m - threshold) * 64.0)
        if reps > 1:
            # Replicate the batch-shared gate across the batch rows of the block.
            m = jnp.concatenate([m] * reps, axis=0)
        o_ref[...] = (x_ref[...] * m).astype(o_ref.dtype)

    return mask_kernel


def _sublane_tile(itemsize: int) -> int:
    return {4: 8, 2: 16, 1: 32}.get(int(itemsize), 8)


def _ceil_to(v: int, m: int) -> int:
    return -(-v // m) * m


def _valid_cols(desired: int, total: int) -> int:
    """A legal column block: the full axis, or a positive multiple of 128."""
    if total <= _LANE or desired >= total:
        return total
    return max(_LANE, (desired // _LANE) * _LANE)


def _padded_bytes(rows: int, cols: int, itemsize: int, sub: int) -> int:
    return _ceil_to(rows, sub) * _ceil_to(cols, _LANE) * itemsize


def _footprint(row_block: int, col_block: int, C: int, itemsize: int, sub: int) -> int:
    """Double-buffered padded VMEM footprint of one grid step (x + out + mask)."""
    xb = _padded_bytes(row_block, col_block, itemsize, sub)
    mb = _padded_bytes(C, col_block, 4, 8)
    return 2 * (2 * xb + mb)


def _target_block_bytes() -> int:
    """Per-generation nominal x-block size (amortizes ~0.35us/step overhead)."""
    try:
        kind = jax.devices()[0].device_kind.lower()
    except Exception:
        return 4 << 20
    if "v7" in kind or "7x" in kind:
        return 8 << 20
    if "v6" in kind:
        return 4 << 20
    return 3 << 20  # v5e and older: already near roofline at modest blocks


def _choose_blocks(R, M, C, itemsize, target_bytes, budget_bytes):
    sub = _sublane_tile(itemsize)
    row_step = (C * sub) // math.gcd(C, sub)            # lcm(C, sublane tile)
    col_floor = _valid_cols(max(1, 2048 // itemsize), M)  # >=2KiB contiguous per row

    # Rows: take them all if a minimum-width block fits the padded budget,
    # otherwise the largest multiple of lcm(C, sublane) that does.
    if _footprint(R, col_floor, C, itemsize, sub) <= budget_bytes:
        row_block = R
    else:
        mask_b = _padded_bytes(C, col_floor, 4, 8)
        max_rows = (budget_bytes // 2 - mask_b) // (2 * _ceil_to(col_floor, _LANE) * itemsize)
        row_block = max(row_step, (max_rows // row_step) * row_step)
        if row_block >= R:
            row_block = R

    # Columns: aim for ~target_bytes of x per block, capped by padded footprint.
    per_pcol = 2 * _ceil_to(row_block, sub) * itemsize + _ceil_to(C, 8) * 4
    max_pcols = max(_LANE, (budget_bytes // 2) // per_pcol)
    desired = max(col_floor, target_bytes // max(1, row_block * itemsize))
    col_block = max(col_floor, _valid_cols(min(desired, max_pcols), M))

    # Keep at least two grid steps so both v7x TensorCores get work.
    if pl.cdiv(R, row_block) * pl.cdiv(M, col_block) < 2 and M > _LANE:
        col_block = _valid_cols(_ceil_to(pl.cdiv(M, 2), _LANE), M)

    return row_block, col_block


def mask_model_forward(x, mask, keep, threshold, *, row_block=None, col_block=None,
                       vmem_limit_bytes=48 * 1024 * 1024):
    """x: (B, C, T, F); mask: (C, T, F); keep: (T, 1). Returns (B, C, T, F)."""
    B, C, T, F = x.shape
    R, M = B * C, T * F
    itemsize = jnp.dtype(x.dtype).itemsize

    # Fold keep into the mask parameter (exact: sigmoid(40) == 1.0f), so the
    # kernel streams only x and the folded mask.
    mask_folded = jnp.where(keep > 0.5, jnp.float32(40.0), mask.astype(jnp.float32))

    # Lane/sublane-dense flattening (pure layout plumbing).
    x2 = x.reshape(R, M)
    mask2 = mask_folded.reshape(C, M)

    budget = max(vmem_limit_bytes * 3 // 4, 8 << 20)
    auto_rb, auto_cb = _choose_blocks(R, M, C, itemsize, _target_block_bytes(), budget)
    row_block = auto_rb if row_block is None else row_block
    col_block = auto_cb if col_block is None else col_block
    assert row_block % C == 0, "row_block must cover whole (batch, channel) groups"

    grid = (pl.cdiv(R, row_block), pl.cdiv(M, col_block))
    kernel = _make_mask_kernel(float(threshold), row_block // C)

    cost = pl.CostEstimate(
        flops=B * C * M + 2 * C * M,                 # x*gate plus gate shift/scale
        transcendentals=2 * C * M * grid[0],         # gate recomputed per row block
        bytes_accessed=2 * R * M * itemsize + C * M * 4,   # x in/out + f32 mask
    )

    out2 = pl.pallas_call(
        kernel,
        out_shape=jax.ShapeDtypeStruct((R, M), x.dtype),
        grid=grid,
        in_specs=[
            pl.BlockSpec((row_block, col_block), lambda i, j: (i, j)),  # x
            pl.BlockSpec((C, col_block), lambda i, j: (0, j)),          # folded mask
        ],
        out_specs=pl.BlockSpec((row_block, col_block), lambda i, j: (i, j)),
        compiler_params=pltpu.CompilerParams(
            dimension_semantics=("parallel", "parallel"),
            vmem_limit_bytes=vmem_limit_bytes,
        ),
        cost_estimate=cost,
    )(x2, mask2)

    return out2.reshape(B, C, T, F)


def init_mask_params(key, input_shape, patch):
    """Deterministic xavier_normal_ equivalent for the 3D mask parameter."""
    C, T, F = input_shape
    # PyTorch fan calc for 3D: fan_in = shape[1]*prod(shape[2:]), fan_out = shape[0]*prod(shape[2:])
    fan_in = T * F
    fan_out = C * F
    std = math.sqrt(2.0 / (fan_in + fan_out))
    mask = jax.random.normal(key, (C, T, F), dtype=jnp.float32) * std
    keep = ((jnp.arange(T) % patch) == 0).astype(jnp.float32)[:, None]  # (T, 1)
    return mask, keep


if __name__ == "__main__":
    # Small shapes consistent with the module's (C, T, F) mask convention.
    B, C, T, F = 2, 8, 16, 32
    patch = 4
    threshold = 0.5

    key = jax.random.PRNGKey(0)
    k_mask, k_x = jax.random.split(key)

    mask, keep = init_mask_params(k_mask, (C, T, F), patch)
    x = jax.random.normal(k_x, (B, C, T, F), dtype=jnp.float32)

    # Auto block chooser gives a (1, 2) pipelined parallel grid for this shape.
    z = mask_model_forward(x, mask, keep, threshold)
    z = jax.block_until_ready(z)

    # Pure-JAX reference (original module math, keep NOT folded) -- silent check.
    m_ref = jax.nn.sigmoid(mask)
    m_ref = m_ref * (1.0 - keep) + keep
    m_ref = jax.nn.sigmoid((m_ref - threshold) * 64.0)
    z_ref = x * m_ref
    assert jnp.allclose(z, z_ref, atol=1e-6, rtol=1e-6)

    print("KERNEL_OK")
</pallas_src>

<mosaic_0001>
module attributes {stable_mosaic.version = 11 : i64} {
  func.func @mask_kernel(%arg0: i32, %arg1: i32, %arg2: memref<16x256xf32, #tpu.memory_space<vmem>>, %arg3: memref<8x256xf32, #tpu.memory_space<vmem>>, %arg4: memref<16x256xf32, #tpu.memory_space<vmem>>) attributes {dimension_semantics = [#tpu.dimension_semantics<parallel>, #tpu.dimension_semantics<parallel>], iteration_bounds = array<i64: 1, 2>, scalar_prefetch = 0 : i64, scratch_operands = 0 : i64, tpu.core_type = #tpu.core_type<tc>, window_params = [{transform_indices = @transform_0, window_bounds = array<i64: 16, 256>}, {transform_indices = @transform_1, window_bounds = array<i64: 8, 256>}, {transform_indices = @transform_2, window_bounds = array<i64: 16, 256>}]} {
    %c0 = arith.constant 0 : index
    %c0_0 = arith.constant 0 : index
    %0 = vector.load %arg3[%c0, %c0_0] : memref<8x256xf32, #tpu.memory_space<vmem>>, vector<8x256xf32>
    %1 = arith.negf %0 : vector<8x256xf32>
    %2 = math.exp %1 : vector<8x256xf32>
    %cst = arith.constant 1.000000e+00 : f32
    %3 = vector.broadcast %cst : f32 to vector<8x256xf32>
    %4 = arith.addf %3, %2 : vector<8x256xf32>
    %5 = arith.divf %3, %4 : vector<8x256xf32>
    %cst_1 = arith.constant 5.000000e-01 : f32
    %6 = vector.broadcast %cst_1 : f32 to vector<8x256xf32>
    %7 = arith.subf %5, %6 : vector<8x256xf32>
    %cst_2 = arith.constant 6.400000e+01 : f32
    %8 = vector.broadcast %cst_2 : f32 to vector<8x256xf32>
    %9 = arith.mulf %7, %8 : vector<8x256xf32>
    %10 = arith.negf %9 : vector<8x256xf32>
    %11 = math.exp %10 : vector<8x256xf32>
    %cst_3 = arith.constant 1.000000e+00 : f32
    %12 = vector.broadcast %cst_3 : f32 to vector<8x256xf32>
    %13 = arith.addf %12, %11 : vector<8x256xf32>
    %14 = arith.divf %12, %13 : vector<8x256xf32>
    %15 = tpu.concatenate %14, %14 in 0 : vector<8x256xf32>, vector<8x256xf32> -> vector<16x256xf32>
    %c0_4 = arith.constant 0 : index
    %c0_5 = arith.constant 0 : index
    %16 = vector.load %arg2[%c0_4, %c0_5] : memref<16x256xf32, #tpu.memory_space<vmem>>, vector<16x256xf32>
    %17 = arith.mulf %16, %15 : vector<16x256xf32>
    %c0_6 = arith.constant 0 : index
    %c0_7 = arith.constant 0 : index
    %18 = vector.load %arg4[%c0_6, %c0_7] : memref<16x256xf32, #tpu.memory_space<vmem>>, vector<16x256xf32>
    tpu.vector_store %arg4[%c0_6, %c0_7], %17 {strides = array<i32>} : memref<16x256xf32, #tpu.memory_space<vmem>>, vector<16x256xf32>,
    return
  }
  func.func @transform_0(%arg0: i32, %arg1: i32) -> (i32, i32) {
    %c0_i32 = arith.constant 0 : i32
    return %arg0, %arg1 : i32, i32
  }
  func.func @transform_1(%arg0: i32, %arg1: i32) -> (i32, i32) {
    %c0_i32 = arith.constant 0 : i32
    %c0_i32_0 = arith.constant 0 : i32
    return %c0_i32, %arg1 : i32, i32
  }
  func.func @transform_2(%arg0: i32, %arg1: i32) -> (i32, i32) {
    %c0_i32 = arith.constant 0 : i32
    return %arg0, %arg1 : i32, i32
  }
}

</mosaic_0001>

<llo_original>
// kernel: tpu_custom_call.1
$region0: #{tpu_custom_call.1}
  #allocation0 [shape = 'u32[]', space=smem, size = 0x4, offset = 0x4, fixed_abs, tag = 'smem constant byte address 0x4 - core index']
  #allocation1 [shape = 'u32[144,128]{1,0:T(1,128)}', space=vmem, size = 0x12000, scoped, tag = 'internal scratch']
  %s0 = inlined_call_operand.hbm [shape: f32[16,512], index: 0, kind: input, shape index: {}]
  %s1 = inlined_call_operand.hbm [shape: f32[8,512], index: 1, kind: input, shape index: {}]
  %s2 = inlined_call_operand.hbm [shape: f32[16,512], index: 2, kind: output, shape index: {}]
  %s3 = sld [smem:[#allocation0]]
  $region49: #{tpu_custom_call.1} parent=0
    _
  %s5 = ssub.s32 1, %s3
  %s6 = scalar_select 0, %s5, %s3
  $region1: #{tpu_custom_call.1} parent=0
    #allocation2 [shape = 'u8[32768]{0}', space=vmem, size = 0x8000, scoped, tag = 'input window, operand 0']
    #allocation3 [shape = 's32[2]{0}', space=sflag, size = 0x8, scoped, tag = 'scoped memory for tpu_custom_call.1']
    #allocation4 [shape = 's32[2]{0}', space=sflag, size = 0x8, scoped, tag = 'scoped memory for tpu_custom_call.1']
    #allocation5 [shape = 'u8[16384]{0}', space=vmem, size = 0x4000, scoped, tag = 'input window, operand 1']
    #allocation6 [shape = 's32[2]{0}', space=sflag, size = 0x8, scoped, tag = 'scoped memory for tpu_custom_call.1']
    #allocation7 [shape = 'u8[32768]{0}', space=vmem, size = 0x8000, scoped, tag = 'output window, operand 0']
    %7 = vsyncpa [#allocation3], 0
    %s8 = scalar_lea.sflag [#allocation3], 1
    %9 = vsyncpa %s8, 0
    %10 = vsyncpa [#allocation6], 0
    %s11 = scalar_lea.sflag [#allocation6], 1
    %12 = vsyncpa %s11, 0
    %13 = vsyncpa [#allocation4], 0
    %s14 = scalar_lea.sflag [#allocation4], 1
    %15 = vsyncpa %s14, 0
    loop: start=0, step=1, limit=4
    $region2: #{tpu_custom_call.1} parent=1 // loop_pre_header
      _
    $region3: #{tpu_custom_call.1} parent=1 // loop_header
      %s17 = sphi 0, %s21
      %p18 = scmp.ge.s32.totalorder %s17, 4
      %s24 = sphi 0, %s36
      %s25 = sphi 0, %s32
      %s26 = sphi 0, %s24
      %s27 = sphi 0, %s25
      %s28 = sphi 0, %s26
      %s29 = sphi 0, %s27
      %s41 = sphi 0, %s43
      %s44 = sphi 0, %s41
      %s45 = sphi 0, %s44
      %s61 = sphi 0, %s45
      %s67 = sphi 0, %s69
      %s70 = sphi 0, %s67
      %s71 = sphi 0, %s70
      %s87 = sphi 0, %s71
      %s95 = sphi 0, %s97
      %s98 = sphi 0, %s95
      %s99 = sphi 0, %s98
      %s115 = sphi 0, %s99
    $region4: #{tpu_custom_call.1} parent=1 // loop_header_branch
      %20 = sbr.rel (%p18) target = $region8
    $region5: #{tpu_custom_call.1} parent=1 // loop_body
      %s22 = ssub.s32 %s17, 1
      %s23 = ssub.s32 %s17, 2
      %s30 = sadd.s32 1, %s25
      %p31 = scmp.ge.s32.totalorder %s30, 2
      %s32 = scalar_select %p31, 0, %s30
      %s33 = sadd.s32 1, %s24
      %s34 = scalar_select %p31, %s33, %s24
      %p35 = scmp.ge.s32.totalorder %s34, 1
      %s36 = scalar_select %p35, 0, %s34
      %s37 = ssub.s32 %s24, %s36
      %s38 = ssub.s32 %s25, %s32
      %s39 = sor.u32 %s37, %s38
      %p40 = scmp.eq.s32.totalorder %s39, 0
      %s42 = sadd.s32 %s41, 1
      %s43 = scalar_select %p40, %s41, %s42
      %p46 = pneg %p40
      %p47 = scmp.eq.s32.totalorder %s17, 1
      %p48 = por %p46, %p47
      %p49 = scmp.ne.s32.totalorder %s41, %s44
      %p50 = scmp.eq.s32.totalorder %s17, 0
      %p51 = por %p49, %p50
      %p52 = scmp.ne.s32.totalorder %s41, %s44
      %p53 = scmp.eq.s32.totalorder %s22, 1
      %p54 = por %p52, %p53
      %p55 = scmp.ne.s32.totalorder %s44, %s45
      %p56 = scmp.eq.s32.totalorder %s22, 0
      %p57 = por %p55, %p56
      %p58 = scmp.ne.s32.totalorder %s44, %s45
      %p59 = scmp.eq.s32.totalorder %s23, 1
      %p60 = por %p58, %p59
      %p62 = scmp.ne.s32.totalorder %s45, %s61
      %p63 = scmp.eq.s32.totalorder %s23, 0
      %p64 = por %p62, %p63
      %s65 = ssub.s32 %s25, %s32
      %p66 = scmp.eq.s32.totalorder %s65, 0
      %s68 = sadd.s32 %s67, 1
      %s69 = scalar_select %p66, %s67, %s68
      %p72 = pneg %p66
      %p73 = scmp.eq.s32.totalorder %s17, 1
      %p74 = por %p72, %p73
      %p75 = scmp.ne.s32.totalorder %s67, %s70
      %p76 = scmp.eq.s32.totalorder %s17, 0
      %p77 = por %p75, %p76
      %p78 = scmp.ne.s32.totalorder %s67, %s70
      %p79 = scmp.eq.s32.totalorder %s22, 1
      %p80 = por %p78, %p79
      %p81 = scmp.ne.s32.totalorder %s70, %s71
      %p82 = scmp.eq.s32.totalorder %s22, 0
      %p83 = por %p81, %p82
      %p84 = scmp.ne.s32.totalorder %s70, %s71
      %p85 = scmp.eq.s32.totalorder %s23, 1
      %p86 = por %p84, %p85
      %p88 = scmp.ne.s32.totalorder %s71, %s87
      %p89 = scmp.eq.s32.totalorder %s23, 0
      %p90 = por %p88, %p89
      %s91 = ssub.s32 %s24, %s36
      %s92 = ssub.s32 %s25, %s32
      %s93 = sor.u32 %s91, %s92
      %p94 = scmp.eq.s32.totalorder %s93, 0
      %s96 = sadd.s32 %s95, 1
      %s97 = scalar_select %p94, %s95, %s96
      %p100 = pneg %p94
      %p101 = scmp.eq.s32.totalorder %s17, 1
      %p102 = por %p100, %p101
      %p103 = scmp.ne.s32.totalorder %s95, %s98
      %p104 = scmp.eq.s32.totalorder %s17, 0
      %p105 = por %p103, %p104
      %p106 = scmp.ne.s32.totalorder %s95, %s98
      %p107 = scmp.eq.s32.totalorder %s22, 1
      %p108 = por %p106, %p107
      %p109 = scmp.ne.s32.totalorder %s98, %s99
      %p110 = scmp.eq.s32.totalorder %s22, 0
      %p111 = por %p109, %p110
      %p112 = scmp.ne.s32.totalorder %s98, %s99
      %p113 = scmp.eq.s32.totalorder %s23, 1
      %p114 = por %p112, %p113
      %p116 = scmp.ne.s32.totalorder %s99, %s115
      %p117 = scmp.eq.s32.totalorder %s23, 0
      %p118 = por %p116, %p117
      %p119 = scmp.le.s32.totalorder 1, %s17
      %p120 = scmp.lt.s32.totalorder %s17, 3
      %p121 = pnand %p119, %p120
      %p122 = pneg %p121
      // Predicated region
      $region9: #{tpu_custom_call.1} parent=5 // pred_check
        _
      $region10: #{tpu_custom_call.1} parent=5 // pred_check_branch
        %124 = sbr.rel (%p121) target = $region12
      $region11: #{tpu_custom_call.1} parent=5 // pred_region
        %s125 = ssub.s32 %s17, 1
      $region12: #{tpu_custom_call.1} parent=5 // pred_fallthru
        _
      %p126 = scmp.lt.s32.totalorder %s17, 2
      // Predicated region
      $region13: #{tpu_custom_call.1} parent=5 // pred_check
        %p127 = pneg %p126
      $region14: #{tpu_custom_call.1} parent=5 // pred_check_branch
        %129 = sbr.rel (%p127) target = $region16
      $region15: #{tpu_custom_call.1} parent=5 // pred_region
        // Predicated region
        $region17: #{tpu_custom_call.1} parent=15 // pred_check
          %p130 = pneg %p51
        $region18: #{tpu_custom_call.1} parent=15 // pred_check_branch
          %132 = sbr.rel (%p130) target = $region20
        $region19: #{tpu_custom_call.1} parent=15 // pred_region
          %s133 = sand.u32 %s41, 1
          %s134 = scalar_lea.sflag [#allocation3], %s133
          %s135 = sand.u32 %s41, 1
          %s136 = smul.addr %s135, 32
          %s137 = scalar_lea.vmem [#allocation2], %s136
          %s138 = smul.u32 2, %s24
          %s139 = smul.u32 2, %s25
          %s141 = ssub.s32 512, 512
          %142 = vsyncadd %s134, %s141
          %s143 = smul.addr %s138, 4
          %s144 = sadd.s32 %s139, %s143
          %s145 = smul.addr %s144, 128
          %s146 = scalar_lea.hbm %s0, %s145
          %s147 = sshll.u32 %s137, 4
          %s148 = int_to_ptr.vmem [resolvable:$true] %s147
          %153 = dma.hbm_to_vmem [thread:$0]  %s146, 512, %s148, %s134, 512, 256, 16
        $region20: #{tpu_custom_call.1} parent=15 // pred_fallthru
          _
        // Predicated region
        $region21: #{tpu_custom_call.1} parent=15 // pred_check
          %p154 = pneg %p77
        $region22: #{tpu_custom_call.1} parent=15 // pred_check_branch
          %156 = sbr.rel (%p154) target = $region24
        $region23: #{tpu_custom_call.1} parent=15 // pred_region
          %s157 = sand.u32 %s67, 1
          %s158 = scalar_lea.sflag [#allocation6], %s157
          %s159 = sand.u32 %s67, 1
          %s160 = smul.addr %s159, 16
          %s161 = scalar_lea.vmem [#allocation5], %s160
          %s162 = smul.u32 2, %s25
          %s164 = ssub.s32 256, 256
          %165 = vsyncadd %s158, %s164
          %s166 = smul.addr %s162, 128
          %s167 = scalar_lea.hbm %s1, %s166
          %s169 = sshll.u32 %s161, 4
          %s170 = int_to_ptr.vmem [resolvable:$true] %s169
          %172 = dma.hbm_to_vmem [thread:$0]  %s167, 256, %s170, %s158
        $region24: #{tpu_custom_call.1} parent=15 // pred_fallthru
          _
      $region16: #{tpu_custom_call.1} parent=5 // pred_fallthru
        _
      %p173 = scmp.le.s32.totalorder 1, %s17
      %p174 = scmp.lt.s32.totalorder %s17, 3
      %p175 = pnand %p173, %p174
      %p176 = pneg %p175
      // Predicated region
      $region25: #{tpu_custom_call.1} parent=5 // pred_check
        _
      $region26: #{tpu_custom_call.1} parent=5 // pred_check_branch
        %178 = sbr.rel (%p175) target = $region28
      $region27: #{tpu_custom_call.1} parent=5 // pred_region
        %s179 = ssub.s32 %s17, 1
        %s180 = sand.u32 %s44, 1
        %s181 = scalar_lea.sflag [#allocation3], %s180
        %s182 = sand.u32 %s44, 1
        %s183 = smul.addr %s182, 32
        %s184 = scalar_lea.vmem [#allocation2], %s183
        // Predicated region
        $region29: #{tpu_custom_call.1} parent=27 // pred_check
          %p185 = pneg %p57
        $region30: #{tpu_custom_call.1} parent=27 // pred_check_branch
          %187 = sbr.rel (%p185) target = $region32
        $region31: #{tpu_custom_call.1} parent=27 // pred_region
          %188 = dma.done %s181, 512
        $region32: #{tpu_custom_call.1} parent=27 // pred_fallthru
          _
        %s189 = sand.u32 %s70, 1
        %s190 = scalar_lea.sflag [#allocation6], %s189
        %s191 = sand.u32 %s70, 1
        %s192 = smul.addr %s191, 16
        %s193 = scalar_lea.vmem [#allocation5], %s192
        // Predicated region
        $region33: #{tpu_custom_call.1} parent=27 // pred_check
          %p194 = pneg %p83
        $region34: #{tpu_custom_call.1} parent=27 // pred_check_branch
          %196 = sbr.rel (%p194) target = $region36
        $region35: #{tpu_custom_call.1} parent=27 // pred_region
          %197 = dma.done %s190, 256
        $region36: #{tpu_custom_call.1} parent=27 // pred_fallthru
          _
        %s198 = sand.u32 %s44, 1
        %s199 = scalar_lea.sflag [#allocation3], %s198
        %s200 = sand.u32 %s44, 1
        %s201 = smul.addr %s200, 32
        %s202 = scalar_lea.vmem [#allocation2], %s201
        %p203 = pneg %p57
        %p204 = pneg %p54
        %s205 = sand.u32 %s70, 1
        %s206 = scalar_lea.sflag [#allocation6], %s205
        %s207 = sand.u32 %s70, 1
        %s208 = smul.addr %s207, 16
        %s209 = scalar_lea.vmem [#allocation5], %s208
        %p210 = pneg %p83
        %p211 = pneg %p80
        %p212 = pneg %p111
        %p213 = pneg %p108
        %s214 = sand.u32 %s98, 1
        %s215 = scalar_lea.sflag [#allocation4], %s214
        %s216 = sand.u32 %s98, 1
        %s217 = smul.addr %s216, 32
        %s218 = scalar_lea.vmem [#allocation7], %s217
        %s219 = smul.u32 2, %s26
        %s220 = smul.u32 2, %s27
        %s221 = smul.u32 2, %s27
        %s222 = smul.u32 2, %s26
        %s223 = smul.u32 2, %s27
        %v224 = vld [vmem:[%s193] sm:$0xff]
        %v225 = vld [vmem:[%s193 + $0x8] sm:$0xff]
        %v226 = vxor.u32 %v224, 2147483648
        %v227 = vxor.u32 %v225, 2147483648
        %v228 = vmul.f32 %v226, 1.442695
        %v229 = vpow.pop %v228
        %v230 = vmul.f32 %v227, 1.442695
        %v231 = vpow.pop %v230
        %v232 = vadd.f32 %v229, 1.0
        %v233 = vadd.f32 %v231, 1.0
        %v234 = vrcp.pop %v232
        %v235 = vmul.f32 1.0, %v234
        %v236 = vrcp.pop %v233
        %v237 = vmul.f32 1.0, %v236
        %v238 = vsub.f32 %v235, 0.5
        %v239 = vsub.f32 %v237, 0.5
        %v240 = vmul.f32 %v238, 64.0
        %v241 = vmul.f32 %v239, 64.0
        %v242 = vxor.u32 %v240, 2147483648
        %v243 = vxor.u32 %v241, 2147483648
        %v244 = vmul.f32 %v242, 1.442695
        %v245 = vpow.pop %v244
        %v246 = vmul.f32 %v243, 1.442695
        %v247 = vpow.pop %v246
        %v248 = vadd.f32 %v245, 1.0
        %v249 = vadd.f32 %v247, 1.0
        %v250 = vrcp.pop %v248
        %v251 = vmul.f32 1.0, %v250
        %v252 = vrcp.pop %v249
        %v253 = vmul.f32 1.0, %v252
        %v254 = vld [vmem:[%s184] sm:$0xff]
        %v255 = vld [vmem:[%s184 + $0x8] sm:$0xff]
        %v256 = vld [vmem:[%s184 + $0x10] sm:$0xff]
        %v257 = vld [vmem:[%s184 + $0x18] sm:$0xff]
        %v258 = vmul.f32 %v254, %v251
        %v259 = vmul.f32 %v255, %v253
        %v260 = vmul.f32 %v256, %v251
        %v261 = vmul.f32 %v257, %v253
        %262 = vst [vmem:[%s218] sm:$0xff] %v258
        %263 = vst [vmem:[%s218 + $0x8] sm:$0xff] %v259
        %264 = vst [vmem:[%s218 + $0x10] sm:$0xff] %v260
        %265 = vst [vmem:[%s218 + $0x18] sm:$0xff] %v261
        %s266 = sand.u32 %s98, 1
        %s267 = scalar_lea.sflag [#allocation4], %s266
        %s268 = sand.u32 %s98, 1
        %s269 = smul.addr %s268, 32
        %s270 = scalar_lea.vmem [#allocation7], %s269
        // Predicated region
        $region37: #{tpu_custom_call.1} parent=27 // pred_check
          %p271 = pneg %p108
        $region38: #{tpu_custom_call.1} parent=27 // pred_check_branch
          %273 = sbr.rel (%p271) target = $region40
        $region39: #{tpu_custom_call.1} parent=27 // pred_region
          %s274 = smul.u32 2, %s26
          %s275 = smul.u32 2, %s27
          %s277 = ssub.s32 512, 512
          %278 = vsyncadd %s267, %s277
          %s279 = smul.addr %s274, 4
          %s280 = sadd.s32 %s275, %s279
          %s281 = smul.addr %s280, 128
          %s282 = scalar_lea.hbm %s2, %s281
          %s283 = sshll.u32 %s270, 4
          %s284 = int_to_ptr.vmem [resolvable:$true] %s283
          %289 = dma.vmem_to_hbm [thread:$0]  %s284, 512, %s282, %s267, 256, 512, 16
        $region40: #{tpu_custom_call.1} parent=27 // pred_fallthru
          _
      $region28: #{tpu_custom_call.1} parent=5 // pred_fallthru
        _
      %p290 = scmp.le.s32.totalorder 2, %s17
      // Predicated region
      $region41: #{tpu_custom_call.1} parent=5 // pred_check
        %p291 = pneg %p290
      $region42: #{tpu_custom_call.1} parent=5 // pred_check_branch
        %293 = sbr.rel (%p291) target = $region44
      $region43: #{tpu_custom_call.1} parent=5 // pred_region
        %s294 = ssub.s32 %s17, 2
        // Predicated region
        $region45: #{tpu_custom_call.1} parent=43 // pred_check
          %p295 = pneg %p114
        $region46: #{tpu_custom_call.1} parent=43 // pred_check_branch
          %297 = sbr.rel (%p295) target = $region48
        $region47: #{tpu_custom_call.1} parent=43 // pred_region
          %s298 = sand.u32 %s99, 1
          %s299 = scalar_lea.sflag [#allocation4], %s298
          %s300 = sand.u32 %s99, 1
          %s301 = smul.addr %s300, 32
          %s302 = scalar_lea.vmem [#allocation7], %s301
          %303 = dma.done %s299, 512
        $region48: #{tpu_custom_call.1} parent=43 // pred_fallthru
          _
      $region44: #{tpu_custom_call.1} parent=5 // pred_fallthru
        _
    $region6: #{tpu_custom_call.1} parent=1 // loop_footer
      %s21 = sadd.s32 1, %s17
    $region7: #{tpu_custom_call.1} parent=1 // loop_footer_branch
      %16 = sbr.rel target = $region3
    $region8: #{tpu_custom_call.1} parent=1 // loop_exit
      _
    %304 = vsyncpa [#allocation3], 1
    %s305 = scalar_lea.sflag [#allocation3], 1
    %306 = vsyncpa %s305, 1
    %307 = vsyncpa [#allocation6], 1
    %s308 = scalar_lea.sflag [#allocation6], 1
    %309 = vsyncpa %s308, 1
    %310 = vsyncpa [#allocation4], 1
    %s311 = scalar_lea.sflag [#allocation4], 1
    %312 = vsyncpa %s311, 1

</llo_original>
